<compile_context>
chip_gen: v5e
topology: v5e:2x2
jax: 0.10.0
libtpu: 0.0.40
codegen_flags: <defaults>
</compile_context>

<pallas_src>
import math

import jax
import jax.numpy as jnp
from jax import lax
from jax.experimental import pallas as pl
from jax.experimental.pallas import tpu as pltpu

_LANE = 128


def _round_up(x, m):
    return ((x + m - 1) // m) * m


def _vmem_capacity_bytes():
    """Physical VMEM of the current chip; conservative 64 MiB (v7x) fallback."""
    try:
        cap = int(getattr(pltpu.get_tpu_info(), "vmem_capacity_bytes", 0))
        if cap > 0:
            return cap
    except Exception:
        pass
    return 64 << 20


def _tile_bytes(tm, tk, f_pad, item):
    """VMEM needed by the aggregation pass for a (tm, tk) tile."""
    return (2 * tm * tk * item          # adj_eff tiles, double-buffered
            + 2 * tk * f_pad * item     # scaled-support tiles, double-buffered
            + 2 * tm * f_pad * 4        # output blocks (f32), double-buffered
            + tm * f_pad * 4            # f32 accumulator (K-split only; budgeted anyway)
            + 2 * tm * 4 + 2 * f_pad * 4)   # dinv / bias


def _pick_tiles(num_nodes, f_pad, item, vmem_budget, k_tile=None):
    """Row tile TM, contraction tile TK, padded node count."""
    n128 = _round_up(max(num_nodes, _LANE), _LANE)
    # Keep >=2 row tiles whenever N allows so the "parallel" axis feeds both v7x TCs.
    if n128 <= 256:
        tm = 128
    elif n128 <= 1024:
        tm = 256
    else:
        tm = 512

    if k_tile is not None:                          # testing hook: force a K split
        tk = int(k_tile)
        return tm, tk, _round_up(n128, math.lcm(tm, tk))

    n_pad = _round_up(n128, tm)
    if _tile_bytes(tm, n_pad, f_pad, item) <= vmem_budget:
        return tm, n_pad, n_pad                     # full-row contraction, no K axis
    for tk in (4096, 2048, 1024, 512):              # largest K tile that fits VMEM
        if tk < n_pad and _tile_bytes(tm, tk, f_pad, item) <= vmem_budget:
            return tm, tk, _round_up(n128, tk)
    return tm, 512, _round_up(n128, 512)


def _aggregate_kernel(adj_ref, sup_ref, dinv_ref, bias_ref, out_ref):
    """Full-row contraction: out = dinv_rows * (adj_eff_rows @ scaled_support) + bias."""
    out_ref[...] = (jnp.dot(adj_ref[...], sup_ref[...],
                            preferred_element_type=jnp.float32)
                    * dinv_ref[...] + bias_ref[...])


def _aggregate_ksplit_kernel(adj_ref, sup_ref, dinv_ref, bias_ref, out_ref, acc_ref):
    """K-split contraction with a resident f32 accumulator (large-N fallback)."""
    k = pl.program_id(1)

    @pl.when(k == 0)
    def _():
        acc_ref[...] = jnp.zeros_like(acc_ref)

    acc_ref[...] += jnp.dot(adj_ref[...], sup_ref[...],
                            preferred_element_type=jnp.float32)

    @pl.when(k == pl.num_programs(1) - 1)
    def _():
        out_ref[...] = acc_ref[...] * dinv_ref[...] + bias_ref[...]


def sfc_gcn_layer(x, edge_index, S, weight, bias, gamma, *,
                  adj_matmul_dtype=jnp.bfloat16, k_tile=None):
    """JAX wrapper: XLA adjacency/degree fusion + one tiled Pallas aggregation pass."""
    num_nodes = x.shape[0]
    f_out = weight.shape[1]
    f_pad = _round_up(f_out, _LANE)
    stream_dtype = jnp.dtype(adj_matmul_dtype)

    vmem_cap = _vmem_capacity_bytes()
    vmem_budget = (vmem_cap * 3) // 4               # 48 MiB on v7x, 96 MiB on v5e/v6e
    tm, tk, n_pad = _pick_tiles(num_nodes, f_pad, stream_dtype.itemsize,
                                vmem_budget, k_tile=k_tile)

    # ---- XLA glue: adjacency build + (1+g*S) gate + degree, one fusion ----
    src, dst = edge_index[0], edge_index[1]
    adj = jnp.zeros((n_pad, n_pad), jnp.float32)
    adj = adj.at[src, dst].set(1.0)
    adj = adj.at[dst, src].set(1.0)                 # symmetric scatter (no transpose temps)
    diag = jnp.arange(n_pad)
    adj = adj.at[diag, diag].set(1.0)               # self-loops (padding rows get deg = 1)

    if S is not None:
        g = jax.nn.sigmoid(jnp.asarray(gamma, jnp.float32))     # scalar sigmoid, once
        s_pad = jnp.pad(S.astype(jnp.float32),
                        ((0, n_pad - num_nodes), (0, n_pad - num_nodes)))
        adj_eff = adj * (1.0 + g * s_pad)
    else:
        adj_eff = adj

    deg = jnp.sum(adj_eff, axis=1)                  # row degrees (self-loop -> deg >= 1)
    # TODO(synk): like the PyTorch original, negative-enough S can drive deg <= 0 -> NaN.
    dinv = lax.rsqrt(deg)
    adj_stream = adj_eff.astype(stream_dtype)       # single (N,N) HBM stream for the kernel

    # ---- tiny support pass (XLA): X @ W, pre-scaled by column dinv, lane-padded ----
    w_pad = jnp.pad(weight.astype(jnp.float32), ((0, 0), (0, f_pad - f_out)))
    support = jnp.pad(jnp.dot(x.astype(jnp.float32), w_pad),
                      ((0, n_pad - num_nodes), (0, 0)))
    scaled_support = (support * dinv[:, None]).astype(stream_dtype)   # fold dinv[col]
    dinv_col = dinv.reshape(n_pad, 1)
    bias_pad = jnp.pad(bias.astype(jnp.float32), (0, f_pad - f_out)).reshape(1, f_pad)

    # ---- Pallas: tiled adj_eff @ scaled_support, row-scale + bias ----
    n_k = n_pad // tk
    grid = (n_pad // tm, n_k)
    if n_k == 1:
        kernel = _aggregate_kernel
        scratch = []
    else:
        kernel = _aggregate_ksplit_kernel
        scratch = [pltpu.VMEM((tm, f_pad), jnp.float32)]

    out = pl.pallas_call(
        kernel,
        out_shape=jax.ShapeDtypeStruct((n_pad, f_pad), jnp.float32),
        grid_spec=pltpu.PrefetchScalarGridSpec(
            num_scalar_prefetch=0,
            grid=grid,
            in_specs=[
                pl.BlockSpec((tm, tk), lambda i, k: (i, k)),       # adj_eff tile
                pl.BlockSpec((tk, f_pad), lambda i, k: (k, 0)),    # scaled support
                pl.BlockSpec((tm, 1), lambda i, k: (i, 0)),        # dinv rows
                pl.BlockSpec((1, f_pad), lambda i, k: (0, 0)),     # bias
            ],
            out_specs=pl.BlockSpec((tm, f_pad), lambda i, k: (i, 0)),
            scratch_shapes=scratch,
        ),
        compiler_params=pltpu.CompilerParams(
            dimension_semantics=("parallel", "arbitrary"),
            vmem_limit_bytes=int(vmem_budget)),
    )(adj_stream, scaled_support, dinv_col, bias_pad)

    return out[:num_nodes, :f_out]


def _reference(x, edge_index, S, weight, bias, gamma):
    """Pure-JAX reference mirroring the PyTorch forward (f32)."""
    n = x.shape[0]
    src, dst = edge_index[0], edge_index[1]
    adj = jnp.zeros((n, n), jnp.float32).at[src, dst].set(1.0)
    adj = jnp.maximum(adj, adj.T)
    adj = adj.at[jnp.arange(n), jnp.arange(n)].set(1.0)
    g = jax.nn.sigmoid(jnp.float32(gamma))
    if S is not None:
        adj = adj * (1.0 + g * S)
    deg = adj.sum(axis=1)
    dinv = 1.0 / jnp.sqrt(deg)
    norm_adj = adj * dinv[:, None] * dinv[None, :]
    return norm_adj @ (x @ weight) + bias[None, :]


if __name__ == "__main__":
    key = jax.random.PRNGKey(0)

    def make_case(k, n, f_in, f_out, e):
        k1, k2, k3, k4 = jax.random.split(k, 4)
        x = jax.random.normal(k1, (n, f_in), jnp.float32)
        edge_index = jax.random.randint(k2, (2, e), 0, n)
        s = jax.random.uniform(k3, (n, n), jnp.float32)
        s = 0.5 * (s + s.T)                                  # symmetric consistency scores
        bound = (6.0 / (f_in + f_out)) ** 0.5                # xavier_uniform_
        w = jax.random.uniform(k4, (f_in, f_out), jnp.float32, -bound, bound)
        b = jnp.zeros((f_out,), jnp.float32)
        return x, edge_index, s, w, b

    k_a, k_b = jax.random.split(key)
    gamma = 0.5

    # case A: single row tile (N padded to 128), full-row contraction, grid (1, 1)
    case_a = make_case(k_a, 16, 8, 16, 24)
    # case B: multiple row tiles: TM=256, n_pad=768, full-row contraction, grid (3, 1)
    case_b = make_case(k_b, 600, 32, 64, 3000)

    for (x, e, s, w, b) in (case_a, case_b):
        ref = _reference(x, e, s, w, b, gamma)

        # f32 stream: numerically faithful path, tight tolerance
        out32 = sfc_gcn_layer(x, e, s, w, b, gamma, adj_matmul_dtype=jnp.float32)
        jax.block_until_ready(out32)
        assert out32.shape == ref.shape
        assert jnp.allclose(out32, ref, rtol=1e-4, atol=1e-4), \
            float(jnp.max(jnp.abs(out32 - ref)))

        # default bf16 stream (MXU-native, half HBM traffic); looser tolerance vs f32 ref
        out16 = sfc_gcn_layer(x, e, s, w, b, gamma)
        jax.block_until_ready(out16)
        assert jnp.allclose(out16, ref, rtol=3e-2, atol=3e-2), \
            float(jnp.max(jnp.abs(out16 - ref)))

    # forced K-split path: exercises the accumulator kernel (grid (3, 3) with TK=256)
    xb, eb, sb, wb, bb = case_b
    ref_b = _reference(xb, eb, sb, wb, bb, gamma)
    out_ks = sfc_gcn_layer(xb, eb, sb, wb, bb, gamma,
                           adj_matmul_dtype=jnp.float32, k_tile=256)
    jax.block_until_ready(out_ks)
    assert jnp.allclose(out_ks, ref_b, rtol=1e-4, atol=1e-4), \
        float(jnp.max(jnp.abs(out_ks - ref_b)))

    # S = None branch (no gating, single adjacency stream)
    xa, ea, _, wa, ba = case_a
    ref_none = _reference(xa, ea, None, wa, ba, gamma)
    out_none = sfc_gcn_layer(xa, ea, None, wa, ba, gamma, adj_matmul_dtype=jnp.float32)
    jax.block_until_ready(out_none)
    assert jnp.allclose(out_none, ref_none, rtol=1e-4, atol=1e-4), \
        float(jnp.max(jnp.abs(out_none - ref_none)))

    print("KERNEL_OK")
</pallas_src>

<mosaic_0001>
module attributes {stable_mosaic.version = 11 : i64} {
  func.func @_aggregate_kernel(%arg0: i32, %arg1: i32, %arg2: memref<128x128xf32, #tpu.memory_space<vmem>>, %arg3: memref<128x128xf32, #tpu.memory_space<vmem>>, %arg4: memref<128x1xf32, #tpu.memory_space<vmem>>, %arg5: memref<1x128xf32, #tpu.memory_space<vmem>>, %arg6: memref<128x128xf32, #tpu.memory_space<vmem>>) attributes {dimension_semantics = [#tpu.dimension_semantics<parallel>, #tpu.dimension_semantics<arbitrary>], iteration_bounds = array<i64: 1, 1>, scalar_prefetch = 0 : i64, scratch_operands = 0 : i64, tpu.core_type = #tpu.core_type<tc>, window_params = [{transform_indices = @transform_0, window_bounds = array<i64: 128, 128>}, {transform_indices = @transform_1, window_bounds = array<i64: 128, 128>}, {transform_indices = @transform_2, window_bounds = array<i64: 128, 1>}, {pipeline_mode = #tpu.pipeline_mode<synchronous>, transform_indices = @transform_3, window_bounds = array<i64: 1, 128>}, {transform_indices = @transform_4, window_bounds = array<i64: 128, 128>}]} {
    %c0 = arith.constant 0 : index
    %c0_0 = arith.constant 0 : index
    %0 = vector.load %arg2[%c0, %c0_0] : memref<128x128xf32, #tpu.memory_space<vmem>>, vector<128x128xf32>
    %c0_1 = arith.constant 0 : index
    %c0_2 = arith.constant 0 : index
    %1 = vector.load %arg3[%c0_1, %c0_2] : memref<128x128xf32, #tpu.memory_space<vmem>>, vector<128x128xf32>
    %cst = arith.constant dense<0.000000e+00> : vector<128x128xf32>
    %2 = tpu.matmul %0, %1, %cst {dimension_numbers = #tpu.dot_dimension_numbers<[1], [0], [0], [1], [0, 0, 1, 1], [], []>} : vector<128x128xf32>, vector<128x128xf32>, vector<128x128xf32> -> vector<128x128xf32>
    %c0_3 = arith.constant 0 : index
    %c0_4 = arith.constant 0 : index
    %3 = vector.load %arg4[%c0_3, %c0_4] : memref<128x1xf32, #tpu.memory_space<vmem>>, vector<128x1xf32>
    %4 = vector.broadcast %3 : vector<128x1xf32> to vector<128x128xf32>
    %5 = arith.mulf %2, %4 : vector<128x128xf32>
    %c0_5 = arith.constant 0 : index
    %c0_6 = arith.constant 0 : index
    %6 = vector.load %arg5[%c0_5, %c0_6] : memref<1x128xf32, #tpu.memory_space<vmem>>, vector<1x128xf32>
    %7 = vector.broadcast %6 : vector<1x128xf32> to vector<128x128xf32>
    %8 = arith.addf %5, %7 : vector<128x128xf32>
    %c0_7 = arith.constant 0 : index
    %c0_8 = arith.constant 0 : index
    %9 = vector.load %arg6[%c0_7, %c0_8] : memref<128x128xf32, #tpu.memory_space<vmem>>, vector<128x128xf32>
    tpu.vector_store %arg6[%c0_7, %c0_8], %8 {strides = array<i32>} : memref<128x128xf32, #tpu.memory_space<vmem>>, vector<128x128xf32>,
    return
  }
  func.func @transform_0(%arg0: i32, %arg1: i32) -> (i32, i32) {
    %c0_i32 = arith.constant 0 : i32
    return %arg0, %arg1 : i32, i32
  }
  func.func @transform_1(%arg0: i32, %arg1: i32) -> (i32, i32) {
    %c0_i32 = arith.constant 0 : i32
    %c0_i32_0 = arith.constant 0 : i32
    return %arg1, %c0_i32 : i32, i32
  }
  func.func @transform_2(%arg0: i32, %arg1: i32) -> (i32, i32) {
    %c0_i32 = arith.constant 0 : i32
    %c0_i32_0 = arith.constant 0 : i32
    return %arg0, %c0_i32 : i32, i32
  }
  func.func @transform_3(%arg0: i32, %arg1: i32) -> (i32, i32) {
    %c0_i32 = arith.constant 0 : i32
    %c0_i32_0 = arith.constant 0 : i32
    %c0_i32_1 = arith.constant 0 : i32
    return %c0_i32, %c0_i32_0 : i32, i32
  }
  func.func @transform_4(%arg0: i32, %arg1: i32) -> (i32, i32) {
    %c0_i32 = arith.constant 0 : i32
    %c0_i32_0 = arith.constant 0 : i32
    return %arg0, %c0_i32 : i32, i32
  }
}

</mosaic_0001>

<llo_original>
// kernel: tpu_custom_call.1
$region0: #{tpu_custom_call.1}
  #allocation0 [shape = 'u32[]', space=smem, size = 0x4, offset = 0x4, fixed_abs, tag = 'smem constant byte address 0x4 - core index']
  #allocation1 [shape = 'u32[72,128]{1,0:T(1,128)}', space=vmem, size = 0x9000, scoped, tag = 'internal scratch']
  %s0 = inlined_call_operand.vmem [shape: f32[128,128], index: 0, kind: input, shape index: {}]
  %s1 = inlined_call_operand.hbm [shape: f32[128,128], index: 1, kind: input, shape index: {}]
  %s2 = inlined_call_operand.vmem [shape: f32[128,1], index: 2, kind: input, shape index: {}]
  %s3 = inlined_call_operand.vmem [shape: f32[1,128], index: 3, kind: input, shape index: {}]
  %s4 = inlined_call_operand.hbm [shape: f32[128,128], index: 4, kind: output, shape index: {}]
  %s5 = sld [smem:[#allocation0]]
  $region30: #{tpu_custom_call.1} parent=0
    _
  %s7 = ssub.s32 1, %s5
  %s8 = scalar_select 0, %s7, %s5
  $region1: #{tpu_custom_call.1} parent=0
    #allocation2 [shape = 'u8[65536]{0}', space=vmem, size = 0x10000, scoped, tag = 'input window, operand 1, single buffered']
    #allocation3 [shape = 's32[1]{0}', space=sflag, size = 0x4, scoped, tag = 'scoped memory for tpu_custom_call.1']
    #allocation4 [shape = 's32[1]{0}', space=sflag, size = 0x4, scoped, tag = 'scoped memory for tpu_custom_call.1']
    #allocation5 [shape = 'u8[65536]{0}', space=vmem, size = 0x10000, scoped, tag = 'output window, operand 0, single buffered']
    %9 = vsyncpa [#allocation3], 0
    %10 = vsyncpa [#allocation4], 0
    // Predicated region
    $region2: #{tpu_custom_call.1} parent=1 // pred_check
      _
    $region3: #{tpu_custom_call.1} parent=1 // pred_check_branch
      %12 = sbr.rel (0) target = $region5
    $region4: #{tpu_custom_call.1} parent=1 // pred_region
      _
    $region5: #{tpu_custom_call.1} parent=1 // pred_fallthru
      _
    // Predicated region
    $region6: #{tpu_custom_call.1} parent=1 // pred_check
      _
    $region7: #{tpu_custom_call.1} parent=1 // pred_check_branch
      %14 = sbr.rel (0) target = $region9
    $region8: #{tpu_custom_call.1} parent=1 // pred_region
      %16 = vsyncadd [#allocation3], 0
      %s17 = sshll.u32 %s1, 4
      %s18 = int_to_ptr.hbm [resolvable:$true] %s17
      %s19 = sshll.u32 [#allocation2], 4
      %s20 = int_to_ptr.vmem [resolvable:$true] %s19
      %25 = dma.hbm_to_vmem [thread:$0]  %s18, 2048, %s20, [#allocation3], 128, 128, 8
    $region9: #{tpu_custom_call.1} parent=1 // pred_fallthru
      _
    // Predicated region
    $region10: #{tpu_custom_call.1} parent=1 // pred_check
      _
    $region11: #{tpu_custom_call.1} parent=1 // pred_check_branch
      %27 = sbr.rel (0) target = $region13
    $region12: #{tpu_custom_call.1} parent=1 // pred_region
      _
    $region13: #{tpu_custom_call.1} parent=1 // pred_fallthru
      _
    // Predicated region
    $region14: #{tpu_custom_call.1} parent=1 // pred_check
      _
    $region15: #{tpu_custom_call.1} parent=1 // pred_check_branch
      %29 = sbr.rel (0) target = $region17
    $region16: #{tpu_custom_call.1} parent=1 // pred_region
      _
    $region17: #{tpu_custom_call.1} parent=1 // pred_fallthru
      _
    // Predicated region
    $region18: #{tpu_custom_call.1} parent=1 // pred_check
      _
    $region19: #{tpu_custom_call.1} parent=1 // pred_check_branch
      %31 = sbr.rel (0) target = $region21
    $region20: #{tpu_custom_call.1} parent=1 // pred_region
      %33 = dma.done [#allocation3], 2048
    $region21: #{tpu_custom_call.1} parent=1 // pred_fallthru
      _
    %v34 = vld [vmem:[%s0] sm:$0xff]
    %v35 = vld [vmem:[%s0 + $0x8] sm:$0xff]
    %v36 = vld [vmem:[%s0 + $0x10] sm:$0xff]
    %v37 = vld [vmem:[%s0 + $0x18] sm:$0xff]
    %v38 = vld [vmem:[%s0 + $0x20] sm:$0xff]
    %v39 = vld [vmem:[%s0 + $0x28] sm:$0xff]
    %v40 = vld [vmem:[%s0 + $0x30] sm:$0xff]
    %v41 = vld [vmem:[%s0 + $0x38] sm:$0xff]
    %v42 = vld [vmem:[%s0 + $0x40] sm:$0xff]
    %v43 = vld [vmem:[%s0 + $0x48] sm:$0xff]
    %v44 = vld [vmem:[%s0 + $0x50] sm:$0xff]
    %v45 = vld [vmem:[%s0 + $0x58] sm:$0xff]
    %v46 = vld [vmem:[%s0 + $0x60] sm:$0xff]
    %v47 = vld [vmem:[%s0 + $0x68] sm:$0xff]
    %v48 = vld [vmem:[%s0 + $0x70] sm:$0xff]
    %v49 = vld [vmem:[%s0 + $0x78] sm:$0xff]
    %v50 = vld [vmem:[#allocation2] sm:$0xff]
    %v51 = vld [vmem:[#allocation2 + $0x8] sm:$0xff]
    %v52 = vld [vmem:[#allocation2 + $0x10] sm:$0xff]
    %v53 = vld [vmem:[#allocation2 + $0x18] sm:$0xff]
    %v54 = vld [vmem:[#allocation2 + $0x20] sm:$0xff]
    %v55 = vld [vmem:[#allocation2 + $0x28] sm:$0xff]
    %v56 = vld [vmem:[#allocation2 + $0x30] sm:$0xff]
    %v57 = vld [vmem:[#allocation2 + $0x38] sm:$0xff]
    %v58 = vld [vmem:[#allocation2 + $0x40] sm:$0xff]
    %v59 = vld [vmem:[#allocation2 + $0x48] sm:$0xff]
    %v60 = vld [vmem:[#allocation2 + $0x50] sm:$0xff]
    %v61 = vld [vmem:[#allocation2 + $0x58] sm:$0xff]
    %v62 = vld [vmem:[#allocation2 + $0x60] sm:$0xff]
    %v63 = vld [vmem:[#allocation2 + $0x68] sm:$0xff]
    %v64 = vld [vmem:[#allocation2 + $0x70] sm:$0xff]
    %v65 = vld [vmem:[#allocation2 + $0x78] sm:$0xff]
    %66 = vmatpush.msra.mxu0 %v65
    %67 = vmatpush.msra.mxu0 %v64
    %68 = vmatpush.msra.mxu0 %v63
    %69 = vmatpush.msra.mxu0 %v62
    %70 = vmatpush.msra.mxu0 %v61
    %71 = vmatpush.msra.mxu0 %v60
    %72 = vmatpush.msra.mxu0 %v59
    %73 = vmatpush.msra.mxu0 %v58
    %74 = vmatpush.msra.mxu0 %v57
    %75 = vmatpush.msra.mxu0 %v56
    %76 = vmatpush.msra.mxu0 %v55
    %77 = vmatpush.msra.mxu0 %v54
    %78 = vmatpush.msra.mxu0 %v53
    %79 = vmatpush.msra.mxu0 %v52
    %80 = vmatpush.msra.mxu0 %v51
    %81 = vmatpush.msra.mxu0 %v50
    %82 = vmatmul.f32.gmra.mxu0 %v34
    %v83 = vpop.f32.mrf.mxu0
    %v84 = vadd.f32 0.0, %v83
    %85 = vmatmul.f32.gmra.mxu0 %v35
    %v86 = vpop.f32.mrf.mxu0
    %v87 = vadd.f32 0.0, %v86
    %88 = vmatmul.f32.gmra.mxu0 %v36
    %v89 = vpop.f32.mrf.mxu0
    %v90 = vadd.f32 0.0, %v89
    %91 = vmatmul.f32.gmra.mxu0 %v37
    %v92 = vpop.f32.mrf.mxu0
    %v93 = vadd.f32 0.0, %v92
    %94 = vmatmul.f32.gmra.mxu0 %v38
    %v95 = vpop.f32.mrf.mxu0
    %v96 = vadd.f32 0.0, %v95
    %97 = vmatmul.f32.gmra.mxu0 %v39
    %v98 = vpop.f32.mrf.mxu0
    %v99 = vadd.f32 0.0, %v98
    %100 = vmatmul.f32.gmra.mxu0 %v40
    %v101 = vpop.f32.mrf.mxu0
    %v102 = vadd.f32 0.0, %v101
    %103 = vmatmul.f32.gmra.mxu0 %v41
    %v104 = vpop.f32.mrf.mxu0
    %v105 = vadd.f32 0.0, %v104
    %106 = vmatmul.f32.gmra.mxu0 %v42
    %v107 = vpop.f32.mrf.mxu0
    %v108 = vadd.f32 0.0, %v107
    %109 = vmatmul.f32.gmra.mxu0 %v43
    %v110 = vpop.f32.mrf.mxu0
    %v111 = vadd.f32 0.0, %v110
    %112 = vmatmul.f32.gmra.mxu0 %v44
    %v113 = vpop.f32.mrf.mxu0
    %v114 = vadd.f32 0.0, %v113
    %115 = vmatmul.f32.gmra.mxu0 %v45
    %v116 = vpop.f32.mrf.mxu0
    %v117 = vadd.f32 0.0, %v116
    %118 = vmatmul.f32.gmra.mxu0 %v46
    %v119 = vpop.f32.mrf.mxu0
    %v120 = vadd.f32 0.0, %v119
    %121 = vmatmul.f32.gmra.mxu0 %v47
    %v122 = vpop.f32.mrf.mxu0
    %v123 = vadd.f32 0.0, %v122
    %124 = vmatmul.f32.gmra.mxu0 %v48
    %v125 = vpop.f32.mrf.mxu0
    %v126 = vadd.f32 0.0, %v125
    %127 = vmatmul.f32.gmra.mxu0 %v49
    %v128 = vpop.f32.mrf.mxu0
    %v129 = vadd.f32 0.0, %v128
    %130 = vdwg.mxu0
    %v131 = vld [vmem:[%s2] sm:$0xff]
    %v132 = vld [vmem:[%s2 + $0x8] sm:$0xff]
    %v133 = vld [vmem:[%s2 + $0x10] sm:$0xff]
    %v134 = vld [vmem:[%s2 + $0x18] sm:$0xff]
    %v135 = vld [vmem:[%s2 + $0x20] sm:$0xff]
    %v136 = vld [vmem:[%s2 + $0x28] sm:$0xff]
    %v137 = vld [vmem:[%s2 + $0x30] sm:$0xff]
    %v138 = vld [vmem:[%s2 + $0x38] sm:$0xff]
    %v139 = vld [vmem:[%s2 + $0x40] sm:$0xff]
    %v140 = vld [vmem:[%s2 + $0x48] sm:$0xff]
    %v141 = vld [vmem:[%s2 + $0x50] sm:$0xff]
    %v142 = vld [vmem:[%s2 + $0x58] sm:$0xff]
    %v143 = vld [vmem:[%s2 + $0x60] sm:$0xff]
    %v144 = vld [vmem:[%s2 + $0x68] sm:$0xff]
    %v145 = vld [vmem:[%s2 + $0x70] sm:$0xff]
    %v146 = vld [vmem:[%s2 + $0x78] sm:$0xff]
    %148 = vset.pattern.permute.xlu0 0
    %149 = vperm.xlu0 %148, %v131
    %v150 = vpop.permute.xlu0 %149
    %153 = vset.pattern.permute.xlu0 0
    %154 = vperm.xlu0 %153, %v132
    %v155 = vpop.permute.xlu0 %154
    %158 = vset.pattern.permute.xlu0 0
    %159 = vperm.xlu0 %158, %v133
    %v160 = vpop.permute.xlu0 %159
    %163 = vset.pattern.permute.xlu0 0
    %164 = vperm.xlu0 %163, %v134
    %v165 = vpop.permute.xlu0 %164
    %168 = vset.pattern.permute.xlu0 0
    %169 = vperm.xlu0 %168, %v135
    %v170 = vpop.permute.xlu0 %169
    %173 = vset.pattern.permute.xlu0 0
    %174 = vperm.xlu0 %173, %v136
    %v175 = vpop.permute.xlu0 %174
    %178 = vset.pattern.permute.xlu0 0
    %179 = vperm.xlu0 %178, %v137
    %v180 = vpop.permute.xlu0 %179
    %183 = vset.pattern.permute.xlu0 0
    %184 = vperm.xlu0 %183, %v138
    %v185 = vpop.permute.xlu0 %184
    %188 = vset.pattern.permute.xlu0 0
    %189 = vperm.xlu0 %188, %v139
    %v190 = vpop.permute.xlu0 %189
    %193 = vset.pattern.permute.xlu0 0
    %194 = vperm.xlu0 %193, %v140
    %v195 = vpop.permute.xlu0 %194
    %198 = vset.pattern.permute.xlu0 0
    %199 = vperm.xlu0 %198, %v141
    %v200 = vpop.permute.xlu0 %199
    %203 = vset.pattern.permute.xlu0 0
    %204 = vperm.xlu0 %203, %v142
    %v205 = vpop.permute.xlu0 %204
    %208 = vset.pattern.permute.xlu0 0
    %209 = vperm.xlu0 %208, %v143
    %v210 = vpop.permute.xlu0 %209
    %213 = vset.pattern.permute.xlu0 0
    %214 = vperm.xlu0 %213, %v144
    %v215 = vpop.permute.xlu0 %214
    %218 = vset.pattern.permute.xlu0 0
    %219 = vperm.xlu0 %218, %v145
    %v220 = vpop.permute.xlu0 %219
    %223 = vset.pattern.permute.xlu0 0
    %224 = vperm.xlu0 %223, %v146
    %v225 = vpop.permute.xlu0 %224
    %v227 = vmul.f32 %v84, %v150
    %v228 = vmul.f32 %v87, %v155
    %v229 = vmul.f32 %v90, %v160
    %v230 = vmul.f32 %v93, %v165
    %v231 = vmul.f32 %v96, %v170
    %v232 = vmul.f32 %v99, %v175
    %v233 = vmul.f32 %v102, %v180
    %v234 = vmul.f32 %v105, %v185
    %v235 = vmul.f32 %v108, %v190
    %v236 = vmul.f32 %v111, %v195
    %v237 = vmul.f32 %v114, %v200
    %v238 = vmul.f32 %v117, %v205
    %v239 = vmul.f32 %v120, %v210
    %v240 = vmul.f32 %v123, %v215
    %v241 = vmul.f32 %v126, %v220
    %v242 = vmul.f32 %v129, %v225
    %v243 = vld [vmem:[%s3] sm:$0x1]
    %v245 = vperm.slane %v243, 0
    %v247 = vadd.f32 %v227, %v245
    %v248 = vadd.f32 %v228, %v245
    %v249 = vadd.f32 %v229, %v245
    %v250 = vadd.f32 %v230, %v245
    %v251 = vadd.f32 %v231, %v245
    %v252 = vadd.f32 %v232, %v245
    %v253 = vadd.f32 %v233, %v245
    %v254 = vadd.f32 %v234, %v245
    %v255 = vadd.f32 %v235, %v245
    %v256 = vadd.f32 %v236, %v245
    %v257 = vadd.f32 %v237, %v245
    %v258 = vadd.f32 %v238, %v245
    %v259 = vadd.f32 %v239, %v245
    %v260 = vadd.f32 %v240, %v245
    %v261 = vadd.f32 %v241, %v245
    %v262 = vadd.f32 %v242, %v245
    %263 = vst [vmem:[#allocation5] sm:$0xff] %v247
    %264 = vst [vmem:[#allocation5 + $0x8] sm:$0xff] %v248
    %265 = vst [vmem:[#allocation5 + $0x10] sm:$0xff] %v249
    %266 = vst [vmem:[#allocation5 + $0x18] sm:$0xff] %v250
    %267 = vst [vmem:[#allocation5 + $0x20] sm:$0xff] %v251
    %268 = vst [vmem:[#allocation5 + $0x28] sm:$0xff] %v252
    %269 = vst [vmem:[#allocation5 + $0x30] sm:$0xff] %v253
    %270 = vst [vmem:[#allocation5 + $0x38] sm:$0xff] %v254
    %271 = vst [vmem:[#allocation5 + $0x40] sm:$0xff] %v255
    %272 = vst [vmem:[#allocation5 + $0x48] sm:$0xff] %v256
    %273 = vst [vmem:[#allocation5 + $0x50] sm:$0xff] %v257
    %274 = vst [vmem:[#allocation5 + $0x58] sm:$0xff] %v258
    %275 = vst [vmem:[#allocation5 + $0x60] sm:$0xff] %v259
    %276 = vst [vmem:[#allocation5 + $0x68] sm:$0xff] %v260
    %277 = vst [vmem:[#allocation5 + $0x70] sm:$0xff] %v261
    %278 = vst [vmem:[#allocation5 + $0x78] sm:$0xff] %v262
    // Predicated region
    $region22: #{tpu_custom_call.1} parent=1 // pred_check
      _
    $region23: #{tpu_custom_call.1} parent=1 // pred_check_branch
      %280 = sbr.rel (0) target = $region25
    $region24: #{tpu_custom_call.1} parent=1 // pred_region
      %282 = vsyncadd [#allocation4], 0
      %s283 = sshll.u32 [#allocation5], 4
      %s284 = int_to_ptr.vmem [resolvable:$true] %s283
      %s285 = sshll.u32 %s4, 4
      %s286 = int_to_ptr.hbm [resolvable:$true] %s285
      %291 = dma.vmem_to_hbm [thread:$0]  %s284, 2048, %s286, [#allocation4], 128, 128, 8
    $region25: #{tpu_custom_call.1} parent=1 // pred_fallthru
      _
    // Predicated region
    $region26: #{tpu_custom_call.1} parent=1 // pred_check
      _
    $region27: #{tpu_custom_call.1} parent=1 // pred_check_branch
      %293 = sbr.rel (0) target = $region29
    $region28: #{tpu_custom_call.1} parent=1 // pred_region
      %295 = dma.done [#allocation4], 2048
    $region29: #{tpu_custom_call.1} parent=1 // pred_fallthru
      _
    %296 = vsyncpa [#allocation3], 1
    %297 = vsyncpa [#allocation4], 1

</llo_original>
